<compile_context>
chip_gen: v7x
topology: tpu7x:2x2x1
jax: 0.10.0
libtpu: 0.0.40
codegen_flags: <defaults>
</compile_context>

<pallas_src>
import numpy as np
import jax
import jax.numpy as jnp
from jax.experimental import pallas as pl
from jax.experimental.pallas import tpu as pltpu


def _pos_embedding_kernel(ids_ref, emb_ref, pos_ref, out_ref):
    """ids_ref: SMEM (B*S,) int32
       emb_ref: VMEM (V, D) float32
       pos_ref: VMEM (S, D) float32
       out_ref: VMEM (B*S, D) float32 = emb[ids] + tile(pos, (B, 1))"""
    n_tok = out_ref.shape[0]          # B * S (static)
    n_pos = pos_ref.shape[0]          # S     (static)
    vocab = emb_ref.shape[0]          # V     (static)
    n_rep = n_tok // n_pos            # B     (static; (B, S) row-major flatten)

    # Tiny static token count -> fully unrolled scalar-indexed row gathers,
    # accumulated in-register (no per-row VMEM writes).
    rows = []
    for t in range(n_tok):
        idx = jnp.clip(ids_ref[t], 0, vocab - 1)   # scalar id from SMEM, clamped
        rows.append(emb_ref[pl.ds(idx, 1), :])     # (1, D) dynamic row read from VMEM
    slab = jnp.concatenate(rows, axis=0)           # (B*S, D) held in vregs

    # One vectorized positional add: (S, D) -> (B*S, D) tile, single VPU add.
    pos_tiled = jnp.concatenate([pos_ref[...]] * n_rep, axis=0)

    # Single full-block store instead of 16 masked (1, D) stores.
    out_ref[...] = slab + pos_tiled


def position_embedding_forward(ids, emb_table, pos_encoding):
    """ids: (B, S) int32; emb_table: (V, D) f32; pos_encoding: (S_full, D) f32."""
    B, S = ids.shape
    V, D = emb_table.shape
    pos = pos_encoding[:S, :]                      # matches self.pos_encoding[:size]
    ids_flat = ids.reshape(B * S).astype(jnp.int32)

    out_flat = pl.pallas_call(
        _pos_embedding_kernel,
        out_shape=jax.ShapeDtypeStruct((B * S, D), jnp.float32),
        in_specs=[
            pl.BlockSpec(memory_space=pltpu.MemorySpace.SMEM),   # ids -> scalar path
            pl.BlockSpec(memory_space=pltpu.MemorySpace.VMEM),   # embedding table
            pl.BlockSpec(memory_space=pltpu.MemorySpace.VMEM),   # positional encoding
        ],
        out_specs=pl.BlockSpec(memory_space=pltpu.MemorySpace.VMEM),
    )(ids_flat, emb_table, pos)

    return out_flat.reshape(B, S, D)


def get_position_encoding(seq_length, dim, n=10000):
    """Matches PositionEmbedding.get_position_encoding exactly (incl. odd-dim tail zeros)."""
    encoding = np.zeros((seq_length, dim), dtype=np.float64)
    for k in range(seq_length):
        for i in range(dim // 2):
            encoding[k, 2 * i] = np.sin(k / n ** (2 * i / dim))
            encoding[k, 2 * i + 1] = np.cos(k / n ** (2 * i / dim))
    return jnp.asarray(encoding, dtype=jnp.float32)


if __name__ == "__main__":
    # Module hyperparameters (from the reference script)
    number_voc = 100
    seq_length = 40
    n = 10000
    dim = 5

    batch = 2
    seq_in = 8  # input sequence length (<= seq_length)

    key = jax.random.PRNGKey(0)
    k_emb, k_ids = jax.random.split(key)

    # Deterministic "nn.Embedding" weight init (standard normal, like PyTorch default)
    emb_table = jax.random.normal(k_emb, (number_voc, dim), dtype=jnp.float32)
    pos_encoding = get_position_encoding(seq_length, dim, n)

    ids = jax.random.randint(k_ids, (batch, seq_in), 0, number_voc, dtype=jnp.int32)

    out = position_embedding_forward(ids, emb_table, pos_encoding)
    out = jax.block_until_ready(out)

    # Reference check in plain JAX
    ref = emb_table[ids] + pos_encoding[:seq_in][None, :, :]
    np.testing.assert_allclose(np.asarray(out), np.asarray(ref), rtol=1e-6, atol=1e-6)

    print("KERNEL_OK")
</pallas_src>

<mosaic_0001>
module attributes {stable_mosaic.version = 11 : i64} {
  func.func @_pos_embedding_kernel(%arg0: memref<16xi32, #tpu.memory_space<smem>>, %arg1: memref<100x5xf32, #tpu.memory_space<vmem>>, %arg2: memref<8x5xf32, #tpu.memory_space<vmem>>, %arg3: memref<16x5xf32, #tpu.memory_space<vmem>>) attributes {dimension_semantics = [], scalar_prefetch = 0 : i64, scratch_operands = 0 : i64, tpu.core_type = #tpu.core_type<tc>} {
    %c0 = arith.constant 0 : index
    %0 = memref.load %arg0[%c0] : memref<16xi32, #tpu.memory_space<smem>>
    %c0_i32 = arith.constant 0 : i32
    %c99_i32 = arith.constant 99 : i32
    %1 = arith.maxsi %c0_i32, %0 : i32
    %2 = arith.minsi %c99_i32, %1 : i32
    %3 = arith.index_cast %2 : i32 to index
    %c0_0 = arith.constant 0 : index
    %4 = vector.load %arg1[%3, %c0_0] : memref<100x5xf32, #tpu.memory_space<vmem>>, vector<1x5xf32>
    %c1 = arith.constant 1 : index
    %5 = memref.load %arg0[%c1] : memref<16xi32, #tpu.memory_space<smem>>
    %c0_i32_1 = arith.constant 0 : i32
    %c99_i32_2 = arith.constant 99 : i32
    %6 = arith.maxsi %c0_i32_1, %5 : i32
    %7 = arith.minsi %c99_i32_2, %6 : i32
    %8 = arith.index_cast %7 : i32 to index
    %c0_3 = arith.constant 0 : index
    %9 = vector.load %arg1[%8, %c0_3] : memref<100x5xf32, #tpu.memory_space<vmem>>, vector<1x5xf32>
    %c2 = arith.constant 2 : index
    %10 = memref.load %arg0[%c2] : memref<16xi32, #tpu.memory_space<smem>>
    %c0_i32_4 = arith.constant 0 : i32
    %c99_i32_5 = arith.constant 99 : i32
    %11 = arith.maxsi %c0_i32_4, %10 : i32
    %12 = arith.minsi %c99_i32_5, %11 : i32
    %13 = arith.index_cast %12 : i32 to index
    %c0_6 = arith.constant 0 : index
    %14 = vector.load %arg1[%13, %c0_6] : memref<100x5xf32, #tpu.memory_space<vmem>>, vector<1x5xf32>
    %c3 = arith.constant 3 : index
    %15 = memref.load %arg0[%c3] : memref<16xi32, #tpu.memory_space<smem>>
    %c0_i32_7 = arith.constant 0 : i32
    %c99_i32_8 = arith.constant 99 : i32
    %16 = arith.maxsi %c0_i32_7, %15 : i32
    %17 = arith.minsi %c99_i32_8, %16 : i32
    %18 = arith.index_cast %17 : i32 to index
    %c0_9 = arith.constant 0 : index
    %19 = vector.load %arg1[%18, %c0_9] : memref<100x5xf32, #tpu.memory_space<vmem>>, vector<1x5xf32>
    %c4 = arith.constant 4 : index
    %20 = memref.load %arg0[%c4] : memref<16xi32, #tpu.memory_space<smem>>
    %c0_i32_10 = arith.constant 0 : i32
    %c99_i32_11 = arith.constant 99 : i32
    %21 = arith.maxsi %c0_i32_10, %20 : i32
    %22 = arith.minsi %c99_i32_11, %21 : i32
    %23 = arith.index_cast %22 : i32 to index
    %c0_12 = arith.constant 0 : index
    %24 = vector.load %arg1[%23, %c0_12] : memref<100x5xf32, #tpu.memory_space<vmem>>, vector<1x5xf32>
    %c5 = arith.constant 5 : index
    %25 = memref.load %arg0[%c5] : memref<16xi32, #tpu.memory_space<smem>>
    %c0_i32_13 = arith.constant 0 : i32
    %c99_i32_14 = arith.constant 99 : i32
    %26 = arith.maxsi %c0_i32_13, %25 : i32
    %27 = arith.minsi %c99_i32_14, %26 : i32
    %28 = arith.index_cast %27 : i32 to index
    %c0_15 = arith.constant 0 : index
    %29 = vector.load %arg1[%28, %c0_15] : memref<100x5xf32, #tpu.memory_space<vmem>>, vector<1x5xf32>
    %c6 = arith.constant 6 : index
    %30 = memref.load %arg0[%c6] : memref<16xi32, #tpu.memory_space<smem>>
    %c0_i32_16 = arith.constant 0 : i32
    %c99_i32_17 = arith.constant 99 : i32
    %31 = arith.maxsi %c0_i32_16, %30 : i32
    %32 = arith.minsi %c99_i32_17, %31 : i32
    %33 = arith.index_cast %32 : i32 to index
    %c0_18 = arith.constant 0 : index
    %34 = vector.load %arg1[%33, %c0_18] : memref<100x5xf32, #tpu.memory_space<vmem>>, vector<1x5xf32>
    %c7 = arith.constant 7 : index
    %35 = memref.load %arg0[%c7] : memref<16xi32, #tpu.memory_space<smem>>
    %c0_i32_19 = arith.constant 0 : i32
    %c99_i32_20 = arith.constant 99 : i32
    %36 = arith.maxsi %c0_i32_19, %35 : i32
    %37 = arith.minsi %c99_i32_20, %36 : i32
    %38 = arith.index_cast %37 : i32 to index
    %c0_21 = arith.constant 0 : index
    %39 = vector.load %arg1[%38, %c0_21] : memref<100x5xf32, #tpu.memory_space<vmem>>, vector<1x5xf32>
    %c8 = arith.constant 8 : index
    %40 = memref.load %arg0[%c8] : memref<16xi32, #tpu.memory_space<smem>>
    %c0_i32_22 = arith.constant 0 : i32
    %c99_i32_23 = arith.constant 99 : i32
    %41 = arith.maxsi %c0_i32_22, %40 : i32
    %42 = arith.minsi %c99_i32_23, %41 : i32
    %43 = arith.index_cast %42 : i32 to index
    %c0_24 = arith.constant 0 : index
    %44 = vector.load %arg1[%43, %c0_24] : memref<100x5xf32, #tpu.memory_space<vmem>>, vector<1x5xf32>
    %c9 = arith.constant 9 : index
    %45 = memref.load %arg0[%c9] : memref<16xi32, #tpu.memory_space<smem>>
    %c0_i32_25 = arith.constant 0 : i32
    %c99_i32_26 = arith.constant 99 : i32
    %46 = arith.maxsi %c0_i32_25, %45 : i32
    %47 = arith.minsi %c99_i32_26, %46 : i32
    %48 = arith.index_cast %47 : i32 to index
    %c0_27 = arith.constant 0 : index
    %49 = vector.load %arg1[%48, %c0_27] : memref<100x5xf32, #tpu.memory_space<vmem>>, vector<1x5xf32>
    %c10 = arith.constant 10 : index
    %50 = memref.load %arg0[%c10] : memref<16xi32, #tpu.memory_space<smem>>
    %c0_i32_28 = arith.constant 0 : i32
    %c99_i32_29 = arith.constant 99 : i32
    %51 = arith.maxsi %c0_i32_28, %50 : i32
    %52 = arith.minsi %c99_i32_29, %51 : i32
    %53 = arith.index_cast %52 : i32 to index
    %c0_30 = arith.constant 0 : index
    %54 = vector.load %arg1[%53, %c0_30] : memref<100x5xf32, #tpu.memory_space<vmem>>, vector<1x5xf32>
    %c11 = arith.constant 11 : index
    %55 = memref.load %arg0[%c11] : memref<16xi32, #tpu.memory_space<smem>>
    %c0_i32_31 = arith.constant 0 : i32
    %c99_i32_32 = arith.constant 99 : i32
    %56 = arith.maxsi %c0_i32_31, %55 : i32
    %57 = arith.minsi %c99_i32_32, %56 : i32
    %58 = arith.index_cast %57 : i32 to index
    %c0_33 = arith.constant 0 : index
    %59 = vector.load %arg1[%58, %c0_33] : memref<100x5xf32, #tpu.memory_space<vmem>>, vector<1x5xf32>
    %c12 = arith.constant 12 : index
    %60 = memref.load %arg0[%c12] : memref<16xi32, #tpu.memory_space<smem>>
    %c0_i32_34 = arith.constant 0 : i32
    %c99_i32_35 = arith.constant 99 : i32
    %61 = arith.maxsi %c0_i32_34, %60 : i32
    %62 = arith.minsi %c99_i32_35, %61 : i32
    %63 = arith.index_cast %62 : i32 to index
    %c0_36 = arith.constant 0 : index
    %64 = vector.load %arg1[%63, %c0_36] : memref<100x5xf32, #tpu.memory_space<vmem>>, vector<1x5xf32>
    %c13 = arith.constant 13 : index
    %65 = memref.load %arg0[%c13] : memref<16xi32, #tpu.memory_space<smem>>
    %c0_i32_37 = arith.constant 0 : i32
    %c99_i32_38 = arith.constant 99 : i32
    %66 = arith.maxsi %c0_i32_37, %65 : i32
    %67 = arith.minsi %c99_i32_38, %66 : i32
    %68 = arith.index_cast %67 : i32 to index
    %c0_39 = arith.constant 0 : index
    %69 = vector.load %arg1[%68, %c0_39] : memref<100x5xf32, #tpu.memory_space<vmem>>, vector<1x5xf32>
    %c14 = arith.constant 14 : index
    %70 = memref.load %arg0[%c14] : memref<16xi32, #tpu.memory_space<smem>>
    %c0_i32_40 = arith.constant 0 : i32
    %c99_i32_41 = arith.constant 99 : i32
    %71 = arith.maxsi %c0_i32_40, %70 : i32
    %72 = arith.minsi %c99_i32_41, %71 : i32
    %73 = arith.index_cast %72 : i32 to index
    %c0_42 = arith.constant 0 : index
    %74 = vector.load %arg1[%73, %c0_42] : memref<100x5xf32, #tpu.memory_space<vmem>>, vector<1x5xf32>
    %c15 = arith.constant 15 : index
    %75 = memref.load %arg0[%c15] : memref<16xi32, #tpu.memory_space<smem>>
    %c0_i32_43 = arith.constant 0 : i32
    %c99_i32_44 = arith.constant 99 : i32
    %76 = arith.maxsi %c0_i32_43, %75 : i32
    %77 = arith.minsi %c99_i32_44, %76 : i32
    %78 = arith.index_cast %77 : i32 to index
    %c0_45 = arith.constant 0 : index
    %79 = vector.load %arg1[%78, %c0_45] : memref<100x5xf32, #tpu.memory_space<vmem>>, vector<1x5xf32>
    %80 = tpu.concatenate %4, %9, %14, %19, %24, %29, %34, %39, %44, %49, %54, %59, %64, %69, %74, %79 in 0 : vector<1x5xf32>, vector<1x5xf32>, vector<1x5xf32>, vector<1x5xf32>, vector<1x5xf32>, vector<1x5xf32>, vector<1x5xf32>, vector<1x5xf32>, vector<1x5xf32>, vector<1x5xf32>, vector<1x5xf32>, vector<1x5xf32>, vector<1x5xf32>, vector<1x5xf32>, vector<1x5xf32>, vector<1x5xf32> -> vector<16x5xf32>
    %c0_46 = arith.constant 0 : index
    %c0_47 = arith.constant 0 : index
    %81 = vector.load %arg2[%c0_46, %c0_47] : memref<8x5xf32, #tpu.memory_space<vmem>>, vector<8x5xf32>
    %82 = tpu.concatenate %81, %81 in 0 : vector<8x5xf32>, vector<8x5xf32> -> vector<16x5xf32>
    %83 = arith.addf %80, %82 : vector<16x5xf32>
    %c0_48 = arith.constant 0 : index
    %c0_49 = arith.constant 0 : index
    %84 = vector.load %arg3[%c0_48, %c0_49] : memref<16x5xf32, #tpu.memory_space<vmem>>, vector<16x5xf32>
    tpu.vector_store %arg3[%c0_48, %c0_49], %83 {strides = array<i32>} : memref<16x5xf32, #tpu.memory_space<vmem>>, vector<16x5xf32>,
    return
  }
}

</mosaic_0001>

<llo_original>
// kernel: tpu_custom_call.1
$region0: #{tpu_custom_call.1}
  #allocation0 [shape = 'u32[]', space=smem, size = 0x4, offset = 0x4, fixed_abs, tag = 'smem constant byte address 0x4 - core index']
  #allocation1 [shape = 'u32[144,128]{1,0:T(1,128)}', space=vmem, size = 0x12000, scoped, tag = 'internal scratch']
  %s0 = inlined_call_operand.vmem [shape: s32[16], index: 0, kind: input, shape index: {}]
  %s1 = inlined_call_operand.vmem [shape: f32[100,5], index: 1, kind: input, shape index: {}]
  %s2 = inlined_call_operand.vmem [shape: f32[8,5], index: 2, kind: input, shape index: {}]
  %s3 = inlined_call_operand.vmem [shape: f32[16,5], index: 3, kind: output, shape index: {}]
  %s4 = sld [smem:[#allocation0]]
  $region26: #{tpu_custom_call.1} parent=0
    _
  %s6 = ssub.s32 1, %s4
  %s7 = scalar_select 0, %s6, %s4
  $region1: #{tpu_custom_call.1} parent=0
    #allocation2 [shape = 'u8[512]{0}', space=smem, size = 0x200, scoped, tag = 'input window, operand 0, single buffered']
    #allocation3 [shape = 's32[1]{0}', space=sflag, size = 0x4, scoped, tag = 'scoped memory for tpu_custom_call.1']
    %8 = vsyncpa [#allocation3], 0
    // Predicated region
    $region2: #{tpu_custom_call.1} parent=1 // pred_check
      _
    $region3: #{tpu_custom_call.1} parent=1 // pred_check_branch
      %10 = sbr.rel (0) target = $region5
    $region4: #{tpu_custom_call.1} parent=1 // pred_region
      %s12 = ssub.s32 16, 16
      %13 = vsyncadd [#allocation3], %s12
      %s15 = sshll.u32 %s0, 4
      %s16 = int_to_ptr.vmem [resolvable:$true] %s15
      %18 = dma.vmem_to_smem %s16, 16, [#allocation2], [#allocation3]
    $region5: #{tpu_custom_call.1} parent=1 // pred_fallthru
      _
    // Predicated region
    $region6: #{tpu_custom_call.1} parent=1 // pred_check
      _
    $region7: #{tpu_custom_call.1} parent=1 // pred_check_branch
      %20 = sbr.rel (0) target = $region9
    $region8: #{tpu_custom_call.1} parent=1 // pred_region
      _
    $region9: #{tpu_custom_call.1} parent=1 // pred_fallthru
      _
    // Predicated region
    $region10: #{tpu_custom_call.1} parent=1 // pred_check
      _
    $region11: #{tpu_custom_call.1} parent=1 // pred_check_branch
      %22 = sbr.rel (0) target = $region13
    $region12: #{tpu_custom_call.1} parent=1 // pred_region
      _
    $region13: #{tpu_custom_call.1} parent=1 // pred_fallthru
      _
    // Predicated region
    $region14: #{tpu_custom_call.1} parent=1 // pred_check
      _
    $region15: #{tpu_custom_call.1} parent=1 // pred_check_branch
      %24 = sbr.rel (0) target = $region17
    $region16: #{tpu_custom_call.1} parent=1 // pred_region
      %25 = dma.done [#allocation3], 16
    $region17: #{tpu_custom_call.1} parent=1 // pred_fallthru
      _
    %26 = sfence
    %s27 = sld [smem:[#allocation2]]
    %p28 = scmp.gt.s32.totalorder %s27, 0
    %s29 = scalar_select %p28, %s27, 0
    %p30 = scmp.lt.s32.totalorder %s29, 99
    %s31 = scalar_select %p30, %s29, 99
    %s32 = scalar_lea.vmem %s1, %s31
    %v33 = vld [vmem:[%s32] sm:$0x1]
    %s34 = sld [smem:[#allocation2 + $0x1]]
    %p35 = scmp.gt.s32.totalorder %s34, 0
    %s36 = scalar_select %p35, %s34, 0
    %p37 = scmp.lt.s32.totalorder %s36, 99
    %s38 = scalar_select %p37, %s36, 99
    %s39 = scalar_lea.vmem %s1, %s38
    %v40 = vld [vmem:[%s39] sm:$0x1]
    %s41 = sld [smem:[#allocation2 + $0x2]]
    %p42 = scmp.gt.s32.totalorder %s41, 0
    %s43 = scalar_select %p42, %s41, 0
    %p44 = scmp.lt.s32.totalorder %s43, 99
    %s45 = scalar_select %p44, %s43, 99
    %s46 = scalar_lea.vmem %s1, %s45
    %v47 = vld [vmem:[%s46] sm:$0x1]
    %s48 = sld [smem:[#allocation2 + $0x3]]
    %p49 = scmp.gt.s32.totalorder %s48, 0
    %s50 = scalar_select %p49, %s48, 0
    %p51 = scmp.lt.s32.totalorder %s50, 99
    %s52 = scalar_select %p51, %s50, 99
    %s53 = scalar_lea.vmem %s1, %s52
    %v54 = vld [vmem:[%s53] sm:$0x1]
    %s55 = sld [smem:[#allocation2 + $0x4]]
    %p56 = scmp.gt.s32.totalorder %s55, 0
    %s57 = scalar_select %p56, %s55, 0
    %p58 = scmp.lt.s32.totalorder %s57, 99
    %s59 = scalar_select %p58, %s57, 99
    %s60 = scalar_lea.vmem %s1, %s59
    %v61 = vld [vmem:[%s60] sm:$0x1]
    %s62 = sld [smem:[#allocation2 + $0x5]]
    %p63 = scmp.gt.s32.totalorder %s62, 0
    %s64 = scalar_select %p63, %s62, 0
    %p65 = scmp.lt.s32.totalorder %s64, 99
    %s66 = scalar_select %p65, %s64, 99
    %s67 = scalar_lea.vmem %s1, %s66
    %v68 = vld [vmem:[%s67] sm:$0x1]
    %s69 = sld [smem:[#allocation2 + $0x6]]
    %p70 = scmp.gt.s32.totalorder %s69, 0
    %s71 = scalar_select %p70, %s69, 0
    %p72 = scmp.lt.s32.totalorder %s71, 99
    %s73 = scalar_select %p72, %s71, 99
    %s74 = scalar_lea.vmem %s1, %s73
    %v75 = vld [vmem:[%s74] sm:$0x1]
    %s76 = sld [smem:[#allocation2 + $0x7]]
    %p77 = scmp.gt.s32.totalorder %s76, 0
    %s78 = scalar_select %p77, %s76, 0
    %p79 = scmp.lt.s32.totalorder %s78, 99
    %s80 = scalar_select %p79, %s78, 99
    %s81 = scalar_lea.vmem %s1, %s80
    %v82 = vld [vmem:[%s81] sm:$0x1]
    %s83 = sld [smem:[#allocation2 + $0x8]]
    %p84 = scmp.gt.s32.totalorder %s83, 0
    %s85 = scalar_select %p84, %s83, 0
    %p86 = scmp.lt.s32.totalorder %s85, 99
    %s87 = scalar_select %p86, %s85, 99
    %s88 = scalar_lea.vmem %s1, %s87
    %v89 = vld [vmem:[%s88] sm:$0x1]
    %s90 = sld [smem:[#allocation2 + $0x9]]
    %p91 = scmp.gt.s32.totalorder %s90, 0
    %s92 = scalar_select %p91, %s90, 0
    %p93 = scmp.lt.s32.totalorder %s92, 99
    %s94 = scalar_select %p93, %s92, 99
    %s95 = scalar_lea.vmem %s1, %s94
    %v96 = vld [vmem:[%s95] sm:$0x1]
    %s97 = sld [smem:[#allocation2 + $0xa]]
    %p98 = scmp.gt.s32.totalorder %s97, 0
    %s99 = scalar_select %p98, %s97, 0
    %p100 = scmp.lt.s32.totalorder %s99, 99
    %s101 = scalar_select %p100, %s99, 99
    %s102 = scalar_lea.vmem %s1, %s101
    %v103 = vld [vmem:[%s102] sm:$0x1]
    %s104 = sld [smem:[#allocation2 + $0xb]]
    %p105 = scmp.gt.s32.totalorder %s104, 0
    %s106 = scalar_select %p105, %s104, 0
    %p107 = scmp.lt.s32.totalorder %s106, 99
    %s108 = scalar_select %p107, %s106, 99
    %s109 = scalar_lea.vmem %s1, %s108
    %v110 = vld [vmem:[%s109] sm:$0x1]
    %s111 = sld [smem:[#allocation2 + $0xc]]
    %p112 = scmp.gt.s32.totalorder %s111, 0
    %s113 = scalar_select %p112, %s111, 0
    %p114 = scmp.lt.s32.totalorder %s113, 99
    %s115 = scalar_select %p114, %s113, 99
    %s116 = scalar_lea.vmem %s1, %s115
    %v117 = vld [vmem:[%s116] sm:$0x1]
    %s118 = sld [smem:[#allocation2 + $0xd]]
    %p119 = scmp.gt.s32.totalorder %s118, 0
    %s120 = scalar_select %p119, %s118, 0
    %p121 = scmp.lt.s32.totalorder %s120, 99
    %s122 = scalar_select %p121, %s120, 99
    %s123 = scalar_lea.vmem %s1, %s122
    %v124 = vld [vmem:[%s123] sm:$0x1]
    %s125 = sld [smem:[#allocation2 + $0xe]]
    %p126 = scmp.gt.s32.totalorder %s125, 0
    %s127 = scalar_select %p126, %s125, 0
    %p128 = scmp.lt.s32.totalorder %s127, 99
    %s129 = scalar_select %p128, %s127, 99
    %s130 = scalar_lea.vmem %s1, %s129
    %v131 = vld [vmem:[%s130] sm:$0x1]
    %s132 = sld [smem:[#allocation2 + $0xf]]
    %p133 = scmp.gt.s32.totalorder %s132, 0
    %s134 = scalar_select %p133, %s132, 0
    %p135 = scmp.lt.s32.totalorder %s134, 99
    %s136 = scalar_select %p135, %s134, 99
    %s137 = scalar_lea.vmem %s1, %s136
    %v138 = vld [vmem:[%s137] sm:$0x1]
    %v140 = vrot.slane %v40, 7
    %v143 = vrot.slane %v47, 6
    %v146 = vrot.slane %v54, 5
    %v149 = vrot.slane %v61, 4
    %v152 = vrot.slane %v68, 3
    %v155 = vrot.slane %v75, 2
    %v158 = vrot.slane %v82, 1
    %v161 = vrot.slane %v96, 7
    %v164 = vrot.slane %v103, 6
    %v167 = vrot.slane %v110, 5
    %v170 = vrot.slane %v117, 4
    %v173 = vrot.slane %v124, 3
    %v176 = vrot.slane %v131, 2
    %v179 = vrot.slane %v138, 1
    %vm181 = vcmask 1040384
    %v182 = vsel %vm181, %v33, %v140
    %vm183 = vcmask 1041408
    %v184 = vsel %vm183, %v182, %v143
    %vm185 = vcmask 1042432
    %v186 = vsel %vm185, %v184, %v146
    %vm187 = vcmask 1043456
    %v188 = vsel %vm187, %v186, %v149
    %vm189 = vcmask 1044480
    %v190 = vsel %vm189, %v188, %v152
    %vm191 = vcmask 1045504
    %v192 = vsel %vm191, %v190, %v155
    %vm193 = vcmask 1046528
    %v194 = vsel %vm193, %v192, %v158
    %v195 = vsel %vm181, %v89, %v161
    %v196 = vsel %vm183, %v195, %v164
    %v197 = vsel %vm185, %v196, %v167
    %v198 = vsel %vm187, %v197, %v170
    %v199 = vsel %vm189, %v198, %v173
    %v200 = vsel %vm191, %v199, %v176
    %v201 = vsel %vm193, %v200, %v179
    %v202 = vld [vmem:[%s2] sm:$0xff]
    %v203 = vadd.f32 %v194, %v202
    %v204 = vadd.f32 %v201, %v202
    %vm205 = vcmask 39936
    %206 = vst.msk [vmem:[%s3] sm:$0xff] %vm205, %v203
    %207 = vst.msk [vmem:[%s3 + $0x8] sm:$0xff] %vm205, %v204
    // Predicated region
    $region18: #{tpu_custom_call.1} parent=1 // pred_check
      _
    $region19: #{tpu_custom_call.1} parent=1 // pred_check_branch
      %209 = sbr.rel (0) target = $region21
    $region20: #{tpu_custom_call.1} parent=1 // pred_region
      _
    $region21: #{tpu_custom_call.1} parent=1 // pred_fallthru
      _
    // Predicated region
    $region22: #{tpu_custom_call.1} parent=1 // pred_check
      _
    $region23: #{tpu_custom_call.1} parent=1 // pred_check_branch
      %211 = sbr.rel (0) target = $region25
    $region24: #{tpu_custom_call.1} parent=1 // pred_region
      _
    $region25: #{tpu_custom_call.1} parent=1 // pred_fallthru
      _
    %212 = vsyncpa [#allocation3], 1

</llo_original>
